<compile_context>
chip_gen: v6e
topology: v6e:2x2x1
jax: 0.10.0
libtpu: 0.0.40
codegen_flags: <defaults>
</compile_context>

<pallas_src>
import functools

import numpy as np
import jax
import jax.numpy as jnp
from jax.experimental import pallas as pl
from jax.experimental.pallas import tpu as pltpu


def _tap_max_kernel(*refs):
    """refs = (tap_0, ..., tap_{k-1}, out); elementwise max over the taps."""
    *tap_refs, o_ref = refs
    acc = tap_refs[0][...]
    for r in tap_refs[1:]:
        acc = jnp.maximum(acc, r[...])
    o_ref[...] = acc


def _min_value(dtype):
    dtype = jnp.dtype(dtype)
    if jnp.issubdtype(dtype, jnp.floating):
        return jnp.array(-jnp.inf, dtype)
    # TODO(synk): bool inputs would need a `False` pad value here.
    return jnp.array(jnp.iinfo(dtype).min, dtype)


def _round_up(a, b):
    return -(-a // b) * b


def _row_tile(M, Wo, k, itemsize):
    """Output rows per grid step: multiple of the sublane tile, or full M."""
    sub = max(8, 32 // itemsize)          # 8 f32 / 16 bf16 / 32 int8 sublane tiles
    target_bytes = 6 * 1024 * 1024        # ~6 MiB of tap data per grid step
    r = target_bytes // max(1, k * Wo * itemsize)
    r = max(sub, min(r, 4096))
    if r >= M:
        # Whole problem fits in one block; split in two (when legal) so the
        # "parallel" grid axis can occupy both v7x TensorCores.
        if M > sub:
            half = _round_up((M + 1) // 2, sub)
            if half < M:
                return half
        return M                           # full-dim block is always legal
    return (r // sub) * sub


def maxpool2d_ceil(x, kernel_size=3):
    """torch.nn.MaxPool2d(kernel_size=3, ceil_mode=True) on NCHW input."""
    k = s = kernel_size                    # stride defaults to kernel_size
    N, C, H, W = x.shape
    # ceil_mode output sizes (padding=0, dilation=1).  With stride == kernel
    # every window starts in-bounds, so clipped windows are handled exactly by
    # padding with the dtype minimum (it never wins the max).
    Ho = -(-(H - k) // s) + 1
    Wo = -(-(W - k) // s) + 1
    Hp, Wp = (Ho - 1) * s + k, (Wo - 1) * s + k
    neg = _min_value(x.dtype)

    # Fused XLA prepass: pad -> split W into (Wo, k) -> take window-row t ->
    # reduce the k-wide minor axis.  Each tap is written once as a contiguous
    # (M, Wo) array; pad / reshape / slice remain producers inside the reduce
    # fusion, so no padded copy of the full input is written to HBM.
    xp = jnp.pad(x, ((0, 0), (0, 0), (0, Hp - H), (0, Wp - W)),
                 constant_values=neg)
    xw = xp.reshape(N, C, Ho, k, Wo, k)
    M = N * C * Ho
    taps = [xw[:, :, :, t, :, :].max(axis=-1).reshape(M, Wo) for t in range(k)]

    itemsize = jnp.dtype(x.dtype).itemsize
    r_tile = _row_tile(M, Wo, k, itemsize)
    grid = (pl.cdiv(M, r_tile),)
    per_step_bytes = (k + 1) * r_tile * Wo * itemsize
    vmem_limit = int(min(48 * 1024 * 1024,
                         max(8 * 1024 * 1024, 4 * per_step_bytes)))

    out = pl.pallas_call(
        _tap_max_kernel,
        out_shape=jax.ShapeDtypeStruct((M, Wo), x.dtype),
        grid=grid,
        in_specs=[pl.BlockSpec((r_tile, Wo), lambda i: (i, 0)) for _ in range(k)],
        out_specs=pl.BlockSpec((r_tile, Wo), lambda i: (i, 0)),
        compiler_params=pltpu.CompilerParams(
            dimension_semantics=("parallel",),
            vmem_limit_bytes=vmem_limit),
        cost_estimate=pl.CostEstimate(
            flops=(k - 1) * M * Wo,
            transcendentals=0,
            bytes_accessed=(k + 1) * M * Wo * itemsize),
    )(*taps)

    # Exact-fit output: this reshape is a bitcast, no trailing slice copy.
    return out.reshape(N, C, Ho, Wo)


if __name__ == "__main__":
    key = jax.random.PRNGKey(0)
    N, C, H, W = 2, 4, 16, 16
    x = jax.random.normal(key, (N, C, H, W), dtype=jnp.float32)

    pool = jax.jit(functools.partial(maxpool2d_ceil, kernel_size=3))
    y = jax.block_until_ready(pool(x))

    # Reference check: numpy slices clip exactly like ceil_mode windows.
    k = s = 3
    Ho = -(-(H - k) // s) + 1
    Wo = -(-(W - k) // s) + 1
    xn = np.asarray(x)
    ref = np.empty((N, C, Ho, Wo), dtype=np.float32)
    for i in range(Ho):
        for j in range(Wo):
            ref[:, :, i, j] = xn[:, :, s * i:s * i + k,
                                 s * j:s * j + k].max(axis=(2, 3))
    np.testing.assert_allclose(np.asarray(y), ref, rtol=0, atol=0)

    print("KERNEL_OK")
</pallas_src>

<mosaic_0001>
module attributes {stable_mosaic.version = 11 : i64} {
  func.func @_tap_max_kernel(%arg0: i32, %arg1: memref<24x6xf32, #tpu.memory_space<vmem>>, %arg2: memref<24x6xf32, #tpu.memory_space<vmem>>, %arg3: memref<24x6xf32, #tpu.memory_space<vmem>>, %arg4: memref<24x6xf32, #tpu.memory_space<vmem>>) attributes {dimension_semantics = [#tpu.dimension_semantics<parallel>], iteration_bounds = array<i64: 2>, scalar_prefetch = 0 : i64, scratch_operands = 0 : i64, tpu.core_type = #tpu.core_type<tc>, window_params = [{transform_indices = @transform_0, window_bounds = array<i64: 24, 6>}, {transform_indices = @transform_1, window_bounds = array<i64: 24, 6>}, {transform_indices = @transform_2, window_bounds = array<i64: 24, 6>}, {transform_indices = @transform_3, window_bounds = array<i64: 24, 6>}]} {
    %c0 = arith.constant 0 : index
    %c0_0 = arith.constant 0 : index
    %0 = vector.load %arg1[%c0, %c0_0] : memref<24x6xf32, #tpu.memory_space<vmem>>, vector<24x6xf32>
    %c0_1 = arith.constant 0 : index
    %c0_2 = arith.constant 0 : index
    %1 = vector.load %arg2[%c0_1, %c0_2] : memref<24x6xf32, #tpu.memory_space<vmem>>, vector<24x6xf32>
    %2 = arith.maximumf %0, %1 : vector<24x6xf32>
    %c0_3 = arith.constant 0 : index
    %c0_4 = arith.constant 0 : index
    %3 = vector.load %arg3[%c0_3, %c0_4] : memref<24x6xf32, #tpu.memory_space<vmem>>, vector<24x6xf32>
    %4 = arith.maximumf %2, %3 : vector<24x6xf32>
    %c0_5 = arith.constant 0 : index
    %c0_6 = arith.constant 0 : index
    %5 = vector.load %arg4[%c0_5, %c0_6] : memref<24x6xf32, #tpu.memory_space<vmem>>, vector<24x6xf32>
    tpu.vector_store %arg4[%c0_5, %c0_6], %4 {strides = array<i32>} : memref<24x6xf32, #tpu.memory_space<vmem>>, vector<24x6xf32>,
    return
  }
  func.func @transform_0(%arg0: i32) -> (i32, i32) {
    %c0_i32 = arith.constant 0 : i32
    %c0_i32_0 = arith.constant 0 : i32
    return %arg0, %c0_i32 : i32, i32
  }
  func.func @transform_1(%arg0: i32) -> (i32, i32) {
    %c0_i32 = arith.constant 0 : i32
    %c0_i32_0 = arith.constant 0 : i32
    return %arg0, %c0_i32 : i32, i32
  }
  func.func @transform_2(%arg0: i32) -> (i32, i32) {
    %c0_i32 = arith.constant 0 : i32
    %c0_i32_0 = arith.constant 0 : i32
    return %arg0, %c0_i32 : i32, i32
  }
  func.func @transform_3(%arg0: i32) -> (i32, i32) {
    %c0_i32 = arith.constant 0 : i32
    %c0_i32_0 = arith.constant 0 : i32
    return %arg0, %c0_i32 : i32, i32
  }
}

</mosaic_0001>

<llo_original>
// kernel: maxpool2d_ceil.1
$region0: #{maxpool2d_ceil.1}
  #allocation0 [shape = 'u32[]', space=smem, size = 0x4, offset = 0x4, fixed_abs, tag = 'smem constant byte address 0x4 - core index']
  #allocation1 [shape = 'u32[144,128]{1,0:T(1,128)}', space=vmem, size = 0x12000, scoped, tag = 'internal scratch']
  %s0 = inlined_call_operand.vmem [shape: f32[48,6], index: 0, kind: input, shape index: {}]
  %s1 = inlined_call_operand.vmem [shape: f32[48,6], index: 1, kind: input, shape index: {}]
  %s2 = inlined_call_operand.vmem [shape: f32[48,6], index: 2, kind: input, shape index: {}]
  %s3 = inlined_call_operand.vmem [shape: f32[48,6], index: 3, kind: output, shape index: {}]
  %s4 = sld [smem:[#allocation0]]
  $region45: #{maxpool2d_ceil.1} parent=0
    _
  %s6 = ssub.s32 1, %s4
  %s7 = scalar_select 0, %s6, %s4
  loop: start=0, step=1, limit=4
  $region2: #{maxpool2d_ceil.1} parent=0 // loop_pre_header
    _
  $region3: #{maxpool2d_ceil.1} parent=0 // loop_header
    %s9 = sphi 0, %s13
    %p10 = scmp.ge.s32.totalorder %s9, 4
    %s19 = sphi 0, %s21
    %s22 = sphi 0, %s19
    %s23 = sphi 0, %s22
    %s39 = sphi 0, %s23
    %s45 = sphi 0, %s47
    %s48 = sphi 0, %s45
    %s49 = sphi 0, %s48
    %s65 = sphi 0, %s49
    %s71 = sphi 0, %s73
    %s74 = sphi 0, %s71
    %s75 = sphi 0, %s74
    %s91 = sphi 0, %s75
    %s97 = sphi 0, %s99
    %s100 = sphi 0, %s97
    %s101 = sphi 0, %s100
    %s117 = sphi 0, %s101
  $region4: #{maxpool2d_ceil.1} parent=0 // loop_header_branch
    %12 = sbr.rel (%p10) target = $region8
  $region5: #{maxpool2d_ceil.1} parent=0 // loop_body
    %s14 = ssub.s32 %s9, 1
    %s15 = ssub.s32 %s9, 2
    %s16 = sadd.s32 %s9, 1
    %s17 = ssub.s32 %s9, %s16
    %p18 = scmp.eq.s32.totalorder %s17, 0
    %s20 = sadd.s32 %s19, 1
    %s21 = scalar_select %p18, %s19, %s20
    %p24 = pneg %p18
    %p25 = scmp.eq.s32.totalorder %s9, 1
    %p26 = por %p24, %p25
    %p27 = scmp.ne.s32.totalorder %s19, %s22
    %p28 = scmp.eq.s32.totalorder %s9, 0
    %p29 = por %p27, %p28
    %p30 = scmp.ne.s32.totalorder %s19, %s22
    %p31 = scmp.eq.s32.totalorder %s14, 1
    %p32 = por %p30, %p31
    %p33 = scmp.ne.s32.totalorder %s22, %s23
    %p34 = scmp.eq.s32.totalorder %s14, 0
    %p35 = por %p33, %p34
    %p36 = scmp.ne.s32.totalorder %s22, %s23
    %p37 = scmp.eq.s32.totalorder %s15, 1
    %p38 = por %p36, %p37
    %p40 = scmp.ne.s32.totalorder %s23, %s39
    %p41 = scmp.eq.s32.totalorder %s15, 0
    %p42 = por %p40, %p41
    %s43 = ssub.s32 %s9, %s16
    %p44 = scmp.eq.s32.totalorder %s43, 0
    %s46 = sadd.s32 %s45, 1
    %s47 = scalar_select %p44, %s45, %s46
    %p50 = pneg %p44
    %p51 = scmp.eq.s32.totalorder %s9, 1
    %p52 = por %p50, %p51
    %p53 = scmp.ne.s32.totalorder %s45, %s48
    %p54 = scmp.eq.s32.totalorder %s9, 0
    %p55 = por %p53, %p54
    %p56 = scmp.ne.s32.totalorder %s45, %s48
    %p57 = scmp.eq.s32.totalorder %s14, 1
    %p58 = por %p56, %p57
    %p59 = scmp.ne.s32.totalorder %s48, %s49
    %p60 = scmp.eq.s32.totalorder %s14, 0
    %p61 = por %p59, %p60
    %p62 = scmp.ne.s32.totalorder %s48, %s49
    %p63 = scmp.eq.s32.totalorder %s15, 1
    %p64 = por %p62, %p63
    %p66 = scmp.ne.s32.totalorder %s49, %s65
    %p67 = scmp.eq.s32.totalorder %s15, 0
    %p68 = por %p66, %p67
    %s69 = ssub.s32 %s9, %s16
    %p70 = scmp.eq.s32.totalorder %s69, 0
    %s72 = sadd.s32 %s71, 1
    %s73 = scalar_select %p70, %s71, %s72
    %p76 = pneg %p70
    %p77 = scmp.eq.s32.totalorder %s9, 1
    %p78 = por %p76, %p77
    %p79 = scmp.ne.s32.totalorder %s71, %s74
    %p80 = scmp.eq.s32.totalorder %s9, 0
    %p81 = por %p79, %p80
    %p82 = scmp.ne.s32.totalorder %s71, %s74
    %p83 = scmp.eq.s32.totalorder %s14, 1
    %p84 = por %p82, %p83
    %p85 = scmp.ne.s32.totalorder %s74, %s75
    %p86 = scmp.eq.s32.totalorder %s14, 0
    %p87 = por %p85, %p86
    %p88 = scmp.ne.s32.totalorder %s74, %s75
    %p89 = scmp.eq.s32.totalorder %s15, 1
    %p90 = por %p88, %p89
    %p92 = scmp.ne.s32.totalorder %s75, %s91
    %p93 = scmp.eq.s32.totalorder %s15, 0
    %p94 = por %p92, %p93
    %s95 = ssub.s32 %s9, %s16
    %p96 = scmp.eq.s32.totalorder %s95, 0
    %s98 = sadd.s32 %s97, 1
    %s99 = scalar_select %p96, %s97, %s98
    %p102 = pneg %p96
    %p103 = scmp.eq.s32.totalorder %s9, 1
    %p104 = por %p102, %p103
    %p105 = scmp.ne.s32.totalorder %s97, %s100
    %p106 = scmp.eq.s32.totalorder %s9, 0
    %p107 = por %p105, %p106
    %p108 = scmp.ne.s32.totalorder %s97, %s100
    %p109 = scmp.eq.s32.totalorder %s14, 1
    %p110 = por %p108, %p109
    %p111 = scmp.ne.s32.totalorder %s100, %s101
    %p112 = scmp.eq.s32.totalorder %s14, 0
    %p113 = por %p111, %p112
    %p114 = scmp.ne.s32.totalorder %s100, %s101
    %p115 = scmp.eq.s32.totalorder %s15, 1
    %p116 = por %p114, %p115
    %p118 = scmp.ne.s32.totalorder %s101, %s117
    %p119 = scmp.eq.s32.totalorder %s15, 0
    %p120 = por %p118, %p119
    %p121 = scmp.le.s32.totalorder 1, %s9
    %p122 = scmp.lt.s32.totalorder %s9, 3
    %p123 = pnand %p121, %p122
    %p124 = pneg %p123
    // Predicated region
    $region9: #{maxpool2d_ceil.1} parent=5 // pred_check
      _
    $region10: #{maxpool2d_ceil.1} parent=5 // pred_check_branch
      %126 = sbr.rel (%p123) target = $region12
    $region11: #{maxpool2d_ceil.1} parent=5 // pred_region
      %s127 = ssub.s32 %s9, 1
    $region12: #{maxpool2d_ceil.1} parent=5 // pred_fallthru
      _
    %p128 = scmp.lt.s32.totalorder %s9, 2
    // Predicated region
    $region13: #{maxpool2d_ceil.1} parent=5 // pred_check
      %p129 = pneg %p128
    $region14: #{maxpool2d_ceil.1} parent=5 // pred_check_branch
      %131 = sbr.rel (%p129) target = $region16
    $region15: #{maxpool2d_ceil.1} parent=5 // pred_region
      // Predicated region
      $region17: #{maxpool2d_ceil.1} parent=15 // pred_check
        %p132 = pneg %p29
      $region18: #{maxpool2d_ceil.1} parent=15 // pred_check_branch
        %134 = sbr.rel (%p132) target = $region20
      $region19: #{maxpool2d_ceil.1} parent=15 // pred_region
        %s135 = smul.u32 3, %s9
        %p136 = scmp.lt.s32.totalorder %s135, 5
        %s137 = scalar_select %p136, %s135, 5
        %s138 = smul.addr %s137, 8
        %s139 = scalar_lea.vmem %s0, %s138
        %s140 = smul.u32 3, %s9
      $region20: #{maxpool2d_ceil.1} parent=15 // pred_fallthru
        _
      // Predicated region
      $region21: #{maxpool2d_ceil.1} parent=15 // pred_check
        %p141 = pneg %p55
      $region22: #{maxpool2d_ceil.1} parent=15 // pred_check_branch
        %143 = sbr.rel (%p141) target = $region24
      $region23: #{maxpool2d_ceil.1} parent=15 // pred_region
        %s144 = smul.u32 3, %s9
        %p145 = scmp.lt.s32.totalorder %s144, 5
        %s146 = scalar_select %p145, %s144, 5
        %s147 = smul.addr %s146, 8
        %s148 = scalar_lea.vmem %s1, %s147
        %s149 = smul.u32 3, %s9
      $region24: #{maxpool2d_ceil.1} parent=15 // pred_fallthru
        _
      // Predicated region
      $region25: #{maxpool2d_ceil.1} parent=15 // pred_check
        %p150 = pneg %p81
      $region26: #{maxpool2d_ceil.1} parent=15 // pred_check_branch
        %152 = sbr.rel (%p150) target = $region28
      $region27: #{maxpool2d_ceil.1} parent=15 // pred_region
        %s153 = smul.u32 3, %s9
        %p154 = scmp.lt.s32.totalorder %s153, 5
        %s155 = scalar_select %p154, %s153, 5
        %s156 = smul.addr %s155, 8
        %s157 = scalar_lea.vmem %s2, %s156
        %s158 = smul.u32 3, %s9
      $region28: #{maxpool2d_ceil.1} parent=15 // pred_fallthru
        _
    $region16: #{maxpool2d_ceil.1} parent=5 // pred_fallthru
      _
    %p159 = scmp.le.s32.totalorder 1, %s9
    %p160 = scmp.lt.s32.totalorder %s9, 3
    %p161 = pnand %p159, %p160
    %p162 = pneg %p161
    // Predicated region
    $region29: #{maxpool2d_ceil.1} parent=5 // pred_check
      _
    $region30: #{maxpool2d_ceil.1} parent=5 // pred_check_branch
      %164 = sbr.rel (%p161) target = $region32
    $region31: #{maxpool2d_ceil.1} parent=5 // pred_region
      %s165 = ssub.s32 %s9, 1
      %s166 = smul.u32 3, %s14
      %p167 = scmp.lt.s32.totalorder %s166, 5
      %s168 = scalar_select %p167, %s166, 5
      %s169 = smul.addr %s168, 8
      %s170 = scalar_lea.vmem %s0, %s169
      %p171 = pneg %p35
      %p172 = pneg %p32
      %s173 = smul.u32 3, %s14
      %p174 = scmp.lt.s32.totalorder %s173, 5
      %s175 = scalar_select %p174, %s173, 5
      %s176 = smul.addr %s175, 8
      %s177 = scalar_lea.vmem %s1, %s176
      %p178 = pneg %p61
      %p179 = pneg %p58
      %s180 = smul.u32 3, %s14
      %p181 = scmp.lt.s32.totalorder %s180, 5
      %s182 = scalar_select %p181, %s180, 5
      %s183 = smul.addr %s182, 8
      %s184 = scalar_lea.vmem %s2, %s183
      %p185 = pneg %p87
      %p186 = pneg %p84
      %p187 = pneg %p113
      %p188 = pneg %p110
      %s189 = smul.u32 3, %s14
      %p190 = scmp.lt.s32.totalorder %s189, 5
      %s191 = scalar_select %p190, %s189, 5
      %s192 = smul.addr %s191, 8
      %s193 = scalar_lea.vmem %s3, %s192
      %s194 = smul.u32 3, %s14
      %p195 = scmp.lt.s32.totalorder %s194, 5
      %s196 = scalar_select %p195, %s194, 5
      %s197 = smul.addr %s196, 8
      %s198 = scalar_lea.vmem %s0, %s197
      %s199 = smul.u32 3, %s14
      %s200 = smul.u32 3, %s14
      %p201 = scmp.lt.s32.totalorder %s200, 5
      %s202 = scalar_select %p201, %s200, 5
      %s203 = smul.addr %s202, 8
      %s204 = scalar_lea.vmem %s1, %s203
      %s205 = smul.u32 3, %s14
      %s206 = smul.u32 3, %s14
      %p207 = scmp.lt.s32.totalorder %s206, 5
      %s208 = scalar_select %p207, %s206, 5
      %s209 = smul.addr %s208, 8
      %s210 = scalar_lea.vmem %s2, %s209
      %s211 = smul.u32 3, %s14
      %s212 = smul.u32 3, %s14
      %p213 = scmp.lt.s32.totalorder %s212, 5
      %s214 = scalar_select %p213, %s212, 5
      %s215 = smul.addr %s214, 8
      %s216 = scalar_lea.vmem %s3, %s215
      %s217 = smul.u32 3, %s14
      %v218 = vld [vmem:[%s198] sm:$0xff]
      %v219 = vld [vmem:[%s198 + $0x8] sm:$0xff]
      %v220 = vld [vmem:[%s198 + $0x10] sm:$0xff]
      %v221 = vld [vmem:[%s204] sm:$0xff]
      %v222 = vld [vmem:[%s204 + $0x8] sm:$0xff]
      %v223 = vld [vmem:[%s204 + $0x10] sm:$0xff]
      %v224 = vmax.f32 %v218, %v221
      %v225 = vmax.f32 %v219, %v222
      %v226 = vmax.f32 %v220, %v223
      %v227 = vld [vmem:[%s210] sm:$0xff]
      %v228 = vld [vmem:[%s210 + $0x8] sm:$0xff]
      %v229 = vld [vmem:[%s210 + $0x10] sm:$0xff]
      %v230 = vmax.f32 %v224, %v227
      %v231 = vmax.f32 %v225, %v228
      %v232 = vmax.f32 %v226, %v229
      %vm233 = vcmask 48128
      %234 = vst.msk [vmem:[%s216] sm:$0xff] %vm233, %v230
      %235 = vst.msk [vmem:[%s216 + $0x8] sm:$0xff] %vm233, %v231
      %236 = vst.msk [vmem:[%s216 + $0x10] sm:$0xff] %vm233, %v232
      %s237 = smul.u32 3, %s14
      %p238 = scmp.lt.s32.totalorder %s237, 5
      %s239 = scalar_select %p238, %s237, 5
      %s240 = smul.addr %s239, 8
      %s241 = scalar_lea.vmem %s3, %s240
      // Predicated region
      $region33: #{maxpool2d_ceil.1} parent=31 // pred_check
        %p242 = pneg %p110
      $region34: #{maxpool2d_ceil.1} parent=31 // pred_check_branch
        %244 = sbr.rel (%p242) target = $region36
      $region35: #{maxpool2d_ceil.1} parent=31 // pred_region
        %s245 = smul.u32 3, %s14
      $region36: #{maxpool2d_ceil.1} parent=31 // pred_fallthru
        _
    $region32: #{maxpool2d_ceil.1} parent=5 // pred_fallthru
      _
    %p246 = scmp.le.s32.totalorder 2, %s9
    // Predicated region
    $region37: #{maxpool2d_ceil.1} parent=5 // pred_check
      %p247 = pneg %p246
    $region38: #{maxpool2d_ceil.1} parent=5 // pred_check_branch
      %249 = sbr.rel (%p247) target = $region40
    $region39: #{maxpool2d_ceil.1} parent=5 // pred_region
      %s250 = ssub.s32 %s9, 2
      // Predicated region
      $region41: #{maxpool2d_ceil.1} parent=39 // pred_check
        %p251 = pneg %p116
      $region42: #{maxpool2d_ceil.1} parent=39 // pred_check_branch
        %253 = sbr.rel (%p251) target = $region44
      $region43: #{maxpool2d_ceil.1} parent=39 // pred_region
        %s254 = smul.u32 3, %s15
        %p255 = scmp.lt.s32.totalorder %s254, 5
        %s256 = scalar_select %p255, %s254, 5
        %s257 = smul.addr %s256, 8
        %s258 = scalar_lea.vmem %s3, %s257
      $region44: #{maxpool2d_ceil.1} parent=39 // pred_fallthru
        _
    $region40: #{maxpool2d_ceil.1} parent=5 // pred_fallthru
      _
  $region6: #{maxpool2d_ceil.1} parent=0 // loop_footer
    %s13 = sadd.s32 1, %s9
  $region7: #{maxpool2d_ceil.1} parent=0 // loop_footer_branch
    %8 = sbr.rel target = $region3
  $region8: #{maxpool2d_ceil.1} parent=0 // loop_exit
    _

</llo_original>
